<compile_context>
chip_gen: v6e
topology: v6e:2x2x1
jax: 0.10.0
libtpu: 0.0.40
codegen_flags: <defaults>
</compile_context>

<pallas_src>
import jax
import jax.numpy as jnp
from jax.experimental import pallas as pl
from jax.experimental.pallas import tpu as pltpu

IN_FEATURES = 2048
OUT_FEATURES = 12
TB_MAX = 1024  # f32 x tile = 8 MiB, 16 MiB double-buffered -> safe on v7x/v6e/v5e.


def _round_up(x, m):
    return ((x + m - 1) // m) * m


def _cdiv(a, b):
    return (a + b - 1) // b


def _choose_tb(B):
    """Batch tile: aim for >=4 grid steps (megacore on v7x), cap tile at 8 MiB,
    keep it a multiple of 8 (f32 sublane), never (much) larger than B."""
    tb = _round_up(_cdiv(B, 4), 16)
    tb = min(tb, TB_MAX)
    tb = min(tb, _round_up(B, 8))
    return max(tb, 8)


def final_layer_kernel(x_ref, w_ref, b_ref, o_ref):
    # x arrives as f32 (saves an extra HBM pass); cast to bf16 on the VPU for
    # the MXU matmul, accumulate in f32.
    x_bf16 = x_ref[...].astype(jnp.bfloat16)
    acc = jnp.dot(x_bf16, w_ref[...], preferred_element_type=jnp.float32)
    acc = acc + b_ref[...]                      # (TB, 12) + (1, 12) broadcast
    o_ref[...] = jax.nn.sigmoid(acc).astype(o_ref.dtype)


def final_layer(x, w_t, b):
    """x: (B, 2048) f32, w_t: (2048, 12) f32, b: (1, 12) f32 -> (B, 12) f32.

    Computes sigmoid(x @ w_t + b) == PyTorch FinalLayer.forward with
    w_t == fc.weight.T and b == fc.bias.
    """
    B = x.shape[0]
    TB = _choose_tb(B)
    grid = (_cdiv(B, TB),)

    # Only the tiny weight is cast in the wrapper (48 KB — irrelevant traffic).
    w_bf16 = w_t.astype(jnp.bfloat16)

    out = pl.pallas_call(
        final_layer_kernel,
        out_shape=jax.ShapeDtypeStruct((B, OUT_FEATURES), jnp.float32),
        grid=grid,
        in_specs=[
            pl.BlockSpec((TB, IN_FEATURES), lambda i: (i, 0)),             # x tile (f32)
            pl.BlockSpec((IN_FEATURES, OUT_FEATURES), lambda i: (0, 0)),   # W resident
            pl.BlockSpec((1, OUT_FEATURES), lambda i: (0, 0)),             # bias resident
        ],
        out_specs=pl.BlockSpec((TB, OUT_FEATURES), lambda i: (i, 0)),
        compiler_params=pltpu.CompilerParams(
            dimension_semantics=("parallel",),    # shard batch loop across TCs (v7x)
            vmem_limit_bytes=32 * 1024 * 1024,    # 2x 8MiB x-tiles + W/out + headroom
        ),
    )(x, w_bf16, b)

    return out


if __name__ == "__main__":
    key = jax.random.PRNGKey(0)
    kx, kw, kb, kx2 = jax.random.split(key, 4)

    # Deterministic PyTorch-Linear-like init (uniform bound 1/sqrt(fan_in)).
    bound = 1.0 / (IN_FEATURES ** 0.5)
    weight = jax.random.uniform(
        kw, (OUT_FEATURES, IN_FEATURES), jnp.float32, -bound, bound
    )  # fc.weight shape (12, 2048)
    bias = jax.random.uniform(kb, (OUT_FEATURES,), jnp.float32, -bound, bound)

    w_t = weight.T                       # (2048, 12) so the kernel does x @ W_t
    b2d = bias.reshape(1, OUT_FEATURES)  # 2-D for clean VMEM tiling

    # B=8: full block.  B=20: exercises the partial (masked) last batch block
    # that replaced the wrapper-side jnp.pad.
    for B, k in ((8, kx), (20, kx2)):
        x = jax.random.normal(k, (B, IN_FEATURES), jnp.float32)

        out = jax.block_until_ready(final_layer(x, w_t, b2d))
        assert out.shape == (B, OUT_FEATURES)

        # Reference 1: same bf16-quantized inputs, f32 accumulate (tight tol).
        ref_bf16 = jax.nn.sigmoid(
            jnp.dot(
                x.astype(jnp.bfloat16),
                w_t.astype(jnp.bfloat16),
                preferred_element_type=jnp.float32,
            )
            + b2d
        )
        assert jnp.allclose(out, ref_bf16, atol=1e-4, rtol=1e-4)

        # Reference 2: full f32 math (only bf16 input quantization separates them).
        ref_f32 = jax.nn.sigmoid(x @ w_t + b2d)
        assert jnp.allclose(out, ref_f32, atol=2e-2, rtol=2e-2)

    print("KERNEL_OK")
</pallas_src>

<mosaic_0001>
module attributes {stable_mosaic.version = 11 : i64} {
  func.func @final_layer_kernel(%arg0: i32, %arg1: memref<8x2048xf32, #tpu.memory_space<vmem>>, %arg2: memref<2048x12xbf16, #tpu.memory_space<vmem>>, %arg3: memref<1x12xf32, #tpu.memory_space<vmem>>, %arg4: memref<8x12xf32, #tpu.memory_space<vmem>>) attributes {dimension_semantics = [#tpu.dimension_semantics<parallel>], iteration_bounds = array<i64: 1>, scalar_prefetch = 0 : i64, scratch_operands = 0 : i64, tpu.core_type = #tpu.core_type<tc>, window_params = [{transform_indices = @transform_0, window_bounds = array<i64: 8, 2048>}, {pipeline_mode = #tpu.pipeline_mode<synchronous>, transform_indices = @transform_1, window_bounds = array<i64: 2048, 12>}, {pipeline_mode = #tpu.pipeline_mode<synchronous>, transform_indices = @transform_2, window_bounds = array<i64: 1, 12>}, {transform_indices = @transform_3, window_bounds = array<i64: 8, 12>}]} {
    %c0 = arith.constant 0 : index
    %c0_0 = arith.constant 0 : index
    %0 = vector.load %arg1[%c0, %c0_0] : memref<8x2048xf32, #tpu.memory_space<vmem>>, vector<8x2048xf32>
    %1 = arith.truncf %0 : vector<8x2048xf32> to vector<8x2048xbf16>
    %c0_1 = arith.constant 0 : index
    %c0_2 = arith.constant 0 : index
    %2 = vector.load %arg2[%c0_1, %c0_2] : memref<2048x12xbf16, #tpu.memory_space<vmem>>, vector<2048x12xbf16>
    %cst = arith.constant dense<0.000000e+00> : vector<8x12xf32>
    %3 = tpu.matmul %1, %2, %cst {dimension_numbers = #tpu.dot_dimension_numbers<[1], [0], [0], [1], [0, 0, 1, 1], [], []>} : vector<8x2048xbf16>, vector<2048x12xbf16>, vector<8x12xf32> -> vector<8x12xf32>
    %c0_3 = arith.constant 0 : index
    %c0_4 = arith.constant 0 : index
    %4 = vector.load %arg3[%c0_3, %c0_4] : memref<1x12xf32, #tpu.memory_space<vmem>>, vector<1x12xf32>
    %5 = vector.broadcast %4 : vector<1x12xf32> to vector<8x12xf32>
    %6 = arith.addf %3, %5 : vector<8x12xf32>
    %7 = arith.negf %6 : vector<8x12xf32>
    %8 = math.exp %7 : vector<8x12xf32>
    %cst_5 = arith.constant 1.000000e+00 : f32
    %9 = vector.broadcast %cst_5 : f32 to vector<8x12xf32>
    %10 = arith.addf %9, %8 : vector<8x12xf32>
    %11 = arith.divf %9, %10 : vector<8x12xf32>
    %c0_6 = arith.constant 0 : index
    %c0_7 = arith.constant 0 : index
    %12 = vector.load %arg4[%c0_6, %c0_7] : memref<8x12xf32, #tpu.memory_space<vmem>>, vector<8x12xf32>
    tpu.vector_store %arg4[%c0_6, %c0_7], %11 {strides = array<i32>} : memref<8x12xf32, #tpu.memory_space<vmem>>, vector<8x12xf32>,
    return
  }
  func.func @transform_0(%arg0: i32) -> (i32, i32) {
    %c0_i32 = arith.constant 0 : i32
    %c0_i32_0 = arith.constant 0 : i32
    return %arg0, %c0_i32 : i32, i32
  }
  func.func @transform_1(%arg0: i32) -> (i32, i32) {
    %c0_i32 = arith.constant 0 : i32
    %c0_i32_0 = arith.constant 0 : i32
    %c0_i32_1 = arith.constant 0 : i32
    return %c0_i32, %c0_i32_0 : i32, i32
  }
  func.func @transform_2(%arg0: i32) -> (i32, i32) {
    %c0_i32 = arith.constant 0 : i32
    %c0_i32_0 = arith.constant 0 : i32
    %c0_i32_1 = arith.constant 0 : i32
    return %c0_i32, %c0_i32_0 : i32, i32
  }
  func.func @transform_3(%arg0: i32) -> (i32, i32) {
    %c0_i32 = arith.constant 0 : i32
    %c0_i32_0 = arith.constant 0 : i32
    return %arg0, %c0_i32 : i32, i32
  }
}

</mosaic_0001>

<llo_original>
// kernel: tpu_custom_call.1
$region0: #{tpu_custom_call.1}
  #allocation0 [shape = 'u32[]', space=smem, size = 0x4, offset = 0x4, fixed_abs, tag = 'smem constant byte address 0x4 - core index']
  #allocation1 [shape = 'u32[144,128]{1,0:T(1,128)}', space=vmem, size = 0x12000, scoped, tag = 'internal scratch']
  %s0 = inlined_call_operand.vmem [shape: f32[8,2048], index: 0, kind: input, shape index: {}]
  %s1 = inlined_call_operand.vmem [shape: bf16[2048,12], index: 1, kind: input, shape index: {}]
  %s2 = inlined_call_operand.vmem [shape: f32[1,12], index: 2, kind: input, shape index: {}]
  %s3 = inlined_call_operand.hbm [shape: f32[8,12], index: 3, kind: output, shape index: {}]
  %s4 = sld [smem:[#allocation0]]
  $region22: #{tpu_custom_call.1} parent=0
    _
  %s6 = ssub.s32 1, %s4
  %s7 = scalar_select 0, %s6, %s4
  $region1: #{tpu_custom_call.1} parent=0
    #allocation2 [shape = 'u8[4096]{0}', space=vmem, size = 0x1000, scoped, tag = 'output window, operand 0, single buffered']
    #allocation3 [shape = 's32[1]{0}', space=sflag, size = 0x4, scoped, tag = 'scoped memory for tpu_custom_call.1']
    %8 = vsyncpa [#allocation3], 0
    // Predicated region
    $region2: #{tpu_custom_call.1} parent=1 // pred_check
      _
    $region3: #{tpu_custom_call.1} parent=1 // pred_check_branch
      %10 = sbr.rel (0) target = $region5
    $region4: #{tpu_custom_call.1} parent=1 // pred_region
      _
    $region5: #{tpu_custom_call.1} parent=1 // pred_fallthru
      _
    // Predicated region
    $region6: #{tpu_custom_call.1} parent=1 // pred_check
      _
    $region7: #{tpu_custom_call.1} parent=1 // pred_check_branch
      %12 = sbr.rel (0) target = $region9
    $region8: #{tpu_custom_call.1} parent=1 // pred_region
      _
    $region9: #{tpu_custom_call.1} parent=1 // pred_fallthru
      _
    // Predicated region
    $region10: #{tpu_custom_call.1} parent=1 // pred_check
      _
    $region11: #{tpu_custom_call.1} parent=1 // pred_check_branch
      %14 = sbr.rel (0) target = $region13
    $region12: #{tpu_custom_call.1} parent=1 // pred_region
      _
    $region13: #{tpu_custom_call.1} parent=1 // pred_fallthru
      _
    %v16 = vld [vmem:[%s0] sm:$0xff]
    %v17 = vld [vmem:[%s0 + $0x8] sm:$0xff]
    %v18 = vld [vmem:[%s0 + $0x10] sm:$0xff]
    %v19 = vld [vmem:[%s0 + $0x18] sm:$0xff]
    %v20 = vld [vmem:[%s0 + $0x20] sm:$0xff]
    %v21 = vld [vmem:[%s0 + $0x28] sm:$0xff]
    %v22 = vld [vmem:[%s0 + $0x30] sm:$0xff]
    %v23 = vld [vmem:[%s0 + $0x38] sm:$0xff]
    %v24 = vld [vmem:[%s0 + $0x40] sm:$0xff]
    %v25 = vld [vmem:[%s0 + $0x48] sm:$0xff]
    %v26 = vld [vmem:[%s0 + $0x50] sm:$0xff]
    %v27 = vld [vmem:[%s0 + $0x58] sm:$0xff]
    %v28 = vld [vmem:[%s0 + $0x60] sm:$0xff]
    %v29 = vld [vmem:[%s0 + $0x68] sm:$0xff]
    %v30 = vld [vmem:[%s0 + $0x70] sm:$0xff]
    %v31 = vld [vmem:[%s0 + $0x78] sm:$0xff]
    %v32 = vpack.c.bf16 %v16, %v16
    %v33 = vpack.c.bf16 %v17, %v17
    %v34 = vpack.c.bf16 %v18, %v18
    %v35 = vpack.c.bf16 %v19, %v19
    %v36 = vpack.c.bf16 %v20, %v20
    %v37 = vpack.c.bf16 %v21, %v21
    %v38 = vpack.c.bf16 %v22, %v22
    %v39 = vpack.c.bf16 %v23, %v23
    %v40 = vpack.c.bf16 %v24, %v24
    %v41 = vpack.c.bf16 %v25, %v25
    %v42 = vpack.c.bf16 %v26, %v26
    %v43 = vpack.c.bf16 %v27, %v27
    %v44 = vpack.c.bf16 %v28, %v28
    %v45 = vpack.c.bf16 %v29, %v29
    %v46 = vpack.c.bf16 %v30, %v30
    %v47 = vpack.c.bf16 %v31, %v31
    %v48 = vld [vmem:[%s1] sm:$0xf]
    %v49 = vld [vmem:[%s1 + $0x4] sm:$0xf]
    %v50 = vld [vmem:[%s1 + $0x8] sm:$0xf]
    %v51 = vld [vmem:[%s1 + $0xc] sm:$0xf]
    %v52 = vld [vmem:[%s1 + $0x10] sm:$0xf]
    %v53 = vld [vmem:[%s1 + $0x14] sm:$0xf]
    %v54 = vld [vmem:[%s1 + $0x18] sm:$0xf]
    %v55 = vld [vmem:[%s1 + $0x1c] sm:$0xf]
    %v56 = vld [vmem:[%s1 + $0x20] sm:$0xf]
    %v57 = vld [vmem:[%s1 + $0x24] sm:$0xf]
    %v58 = vld [vmem:[%s1 + $0x28] sm:$0xf]
    %v59 = vld [vmem:[%s1 + $0x2c] sm:$0xf]
    %v60 = vld [vmem:[%s1 + $0x30] sm:$0xf]
    %v61 = vld [vmem:[%s1 + $0x34] sm:$0xf]
    %v62 = vld [vmem:[%s1 + $0x38] sm:$0xf]
    %v63 = vld [vmem:[%s1 + $0x3c] sm:$0xf]
    %v64 = vld [vmem:[%s1 + $0x40] sm:$0xf]
    %v65 = vld [vmem:[%s1 + $0x44] sm:$0xf]
    %v66 = vld [vmem:[%s1 + $0x48] sm:$0xf]
    %v67 = vld [vmem:[%s1 + $0x4c] sm:$0xf]
    %v68 = vld [vmem:[%s1 + $0x50] sm:$0xf]
    %v69 = vld [vmem:[%s1 + $0x54] sm:$0xf]
    %v70 = vld [vmem:[%s1 + $0x58] sm:$0xf]
    %v71 = vld [vmem:[%s1 + $0x5c] sm:$0xf]
    %v72 = vld [vmem:[%s1 + $0x60] sm:$0xf]
    %v73 = vld [vmem:[%s1 + $0x64] sm:$0xf]
    %v74 = vld [vmem:[%s1 + $0x68] sm:$0xf]
    %v75 = vld [vmem:[%s1 + $0x6c] sm:$0xf]
    %v76 = vld [vmem:[%s1 + $0x70] sm:$0xf]
    %v77 = vld [vmem:[%s1 + $0x74] sm:$0xf]
    %v78 = vld [vmem:[%s1 + $0x78] sm:$0xf]
    %v79 = vld [vmem:[%s1 + $0x7c] sm:$0xf]
    %v80 = vld [vmem:[%s1 + $0x80] sm:$0xf]
    %v81 = vld [vmem:[%s1 + $0x84] sm:$0xf]
    %v82 = vld [vmem:[%s1 + $0x88] sm:$0xf]
    %v83 = vld [vmem:[%s1 + $0x8c] sm:$0xf]
    %v84 = vld [vmem:[%s1 + $0x90] sm:$0xf]
    %v85 = vld [vmem:[%s1 + $0x94] sm:$0xf]
    %v86 = vld [vmem:[%s1 + $0x98] sm:$0xf]
    %v87 = vld [vmem:[%s1 + $0x9c] sm:$0xf]
    %v88 = vld [vmem:[%s1 + $0xa0] sm:$0xf]
    %v89 = vld [vmem:[%s1 + $0xa4] sm:$0xf]
    %v90 = vld [vmem:[%s1 + $0xa8] sm:$0xf]
    %v91 = vld [vmem:[%s1 + $0xac] sm:$0xf]
    %v92 = vld [vmem:[%s1 + $0xb0] sm:$0xf]
    %v93 = vld [vmem:[%s1 + $0xb4] sm:$0xf]
    %v94 = vld [vmem:[%s1 + $0xb8] sm:$0xf]
    %v95 = vld [vmem:[%s1 + $0xbc] sm:$0xf]
    %v96 = vld [vmem:[%s1 + $0xc0] sm:$0xf]
    %v97 = vld [vmem:[%s1 + $0xc4] sm:$0xf]
    %v98 = vld [vmem:[%s1 + $0xc8] sm:$0xf]
    %v99 = vld [vmem:[%s1 + $0xcc] sm:$0xf]
    %v100 = vld [vmem:[%s1 + $0xd0] sm:$0xf]
    %v101 = vld [vmem:[%s1 + $0xd4] sm:$0xf]
    %v102 = vld [vmem:[%s1 + $0xd8] sm:$0xf]
    %v103 = vld [vmem:[%s1 + $0xdc] sm:$0xf]
    %v104 = vld [vmem:[%s1 + $0xe0] sm:$0xf]
    %v105 = vld [vmem:[%s1 + $0xe4] sm:$0xf]
    %v106 = vld [vmem:[%s1 + $0xe8] sm:$0xf]
    %v107 = vld [vmem:[%s1 + $0xec] sm:$0xf]
    %v108 = vld [vmem:[%s1 + $0xf0] sm:$0xf]
    %v109 = vld [vmem:[%s1 + $0xf4] sm:$0xf]
    %v110 = vld [vmem:[%s1 + $0xf8] sm:$0xf]
    %v111 = vld [vmem:[%s1 + $0xfc] sm:$0xf]
    %v112 = vld [vmem:[%s1 + $0x100] sm:$0xf]
    %v113 = vld [vmem:[%s1 + $0x104] sm:$0xf]
    %v114 = vld [vmem:[%s1 + $0x108] sm:$0xf]
    %v115 = vld [vmem:[%s1 + $0x10c] sm:$0xf]
    %v116 = vld [vmem:[%s1 + $0x110] sm:$0xf]
    %v117 = vld [vmem:[%s1 + $0x114] sm:$0xf]
    %v118 = vld [vmem:[%s1 + $0x118] sm:$0xf]
    %v119 = vld [vmem:[%s1 + $0x11c] sm:$0xf]
    %v120 = vld [vmem:[%s1 + $0x120] sm:$0xf]
    %v121 = vld [vmem:[%s1 + $0x124] sm:$0xf]
    %v122 = vld [vmem:[%s1 + $0x128] sm:$0xf]
    %v123 = vld [vmem:[%s1 + $0x12c] sm:$0xf]
    %v124 = vld [vmem:[%s1 + $0x130] sm:$0xf]
    %v125 = vld [vmem:[%s1 + $0x134] sm:$0xf]
    %v126 = vld [vmem:[%s1 + $0x138] sm:$0xf]
    %v127 = vld [vmem:[%s1 + $0x13c] sm:$0xf]
    %v128 = vld [vmem:[%s1 + $0x140] sm:$0xf]
    %v129 = vld [vmem:[%s1 + $0x144] sm:$0xf]
    %v130 = vld [vmem:[%s1 + $0x148] sm:$0xf]
    %v131 = vld [vmem:[%s1 + $0x14c] sm:$0xf]
    %v132 = vld [vmem:[%s1 + $0x150] sm:$0xf]
    %v133 = vld [vmem:[%s1 + $0x154] sm:$0xf]
    %v134 = vld [vmem:[%s1 + $0x158] sm:$0xf]
    %v135 = vld [vmem:[%s1 + $0x15c] sm:$0xf]
    %v136 = vld [vmem:[%s1 + $0x160] sm:$0xf]
    %v137 = vld [vmem:[%s1 + $0x164] sm:$0xf]
    %v138 = vld [vmem:[%s1 + $0x168] sm:$0xf]
    %v139 = vld [vmem:[%s1 + $0x16c] sm:$0xf]
    %v140 = vld [vmem:[%s1 + $0x170] sm:$0xf]
    %v141 = vld [vmem:[%s1 + $0x174] sm:$0xf]
    %v142 = vld [vmem:[%s1 + $0x178] sm:$0xf]
    %v143 = vld [vmem:[%s1 + $0x17c] sm:$0xf]
    %v144 = vld [vmem:[%s1 + $0x180] sm:$0xf]
    %v145 = vld [vmem:[%s1 + $0x184] sm:$0xf]
    %v146 = vld [vmem:[%s1 + $0x188] sm:$0xf]
    %v147 = vld [vmem:[%s1 + $0x18c] sm:$0xf]
    %v148 = vld [vmem:[%s1 + $0x190] sm:$0xf]
    %v149 = vld [vmem:[%s1 + $0x194] sm:$0xf]
    %v150 = vld [vmem:[%s1 + $0x198] sm:$0xf]
    %v151 = vld [vmem:[%s1 + $0x19c] sm:$0xf]
    %v152 = vld [vmem:[%s1 + $0x1a0] sm:$0xf]
    %v153 = vld [vmem:[%s1 + $0x1a4] sm:$0xf]
    %v154 = vld [vmem:[%s1 + $0x1a8] sm:$0xf]
    %v155 = vld [vmem:[%s1 + $0x1ac] sm:$0xf]
    %v156 = vld [vmem:[%s1 + $0x1b0] sm:$0xf]
    %v157 = vld [vmem:[%s1 + $0x1b4] sm:$0xf]
    %v158 = vld [vmem:[%s1 + $0x1b8] sm:$0xf]
    %v159 = vld [vmem:[%s1 + $0x1bc] sm:$0xf]
    %v160 = vld [vmem:[%s1 + $0x1c0] sm:$0xf]
    %v161 = vld [vmem:[%s1 + $0x1c4] sm:$0xf]
    %v162 = vld [vmem:[%s1 + $0x1c8] sm:$0xf]
    %v163 = vld [vmem:[%s1 + $0x1cc] sm:$0xf]
    %v164 = vld [vmem:[%s1 + $0x1d0] sm:$0xf]
    %v165 = vld [vmem:[%s1 + $0x1d4] sm:$0xf]
    %v166 = vld [vmem:[%s1 + $0x1d8] sm:$0xf]
    %v167 = vld [vmem:[%s1 + $0x1dc] sm:$0xf]
    %v168 = vld [vmem:[%s1 + $0x1e0] sm:$0xf]
    %v169 = vld [vmem:[%s1 + $0x1e4] sm:$0xf]
    %v170 = vld [vmem:[%s1 + $0x1e8] sm:$0xf]
    %v171 = vld [vmem:[%s1 + $0x1ec] sm:$0xf]
    %v172 = vld [vmem:[%s1 + $0x1f0] sm:$0xf]
    %v173 = vld [vmem:[%s1 + $0x1f4] sm:$0xf]
    %v174 = vld [vmem:[%s1 + $0x1f8] sm:$0xf]
    %v175 = vld [vmem:[%s1 + $0x1fc] sm:$0xf]
    %v176 = vld [vmem:[%s1 + $0x200] sm:$0xf]
    %v177 = vld [vmem:[%s1 + $0x204] sm:$0xf]
    %v178 = vld [vmem:[%s1 + $0x208] sm:$0xf]
    %v179 = vld [vmem:[%s1 + $0x20c] sm:$0xf]
    %v180 = vld [vmem:[%s1 + $0x210] sm:$0xf]
    %v181 = vld [vmem:[%s1 + $0x214] sm:$0xf]
    %v182 = vld [vmem:[%s1 + $0x218] sm:$0xf]
    %v183 = vld [vmem:[%s1 + $0x21c] sm:$0xf]
    %v184 = vld [vmem:[%s1 + $0x220] sm:$0xf]
    %v185 = vld [vmem:[%s1 + $0x224] sm:$0xf]
    %v186 = vld [vmem:[%s1 + $0x228] sm:$0xf]
    %v187 = vld [vmem:[%s1 + $0x22c] sm:$0xf]
    %v188 = vld [vmem:[%s1 + $0x230] sm:$0xf]
    %v189 = vld [vmem:[%s1 + $0x234] sm:$0xf]
    %v190 = vld [vmem:[%s1 + $0x238] sm:$0xf]
    %v191 = vld [vmem:[%s1 + $0x23c] sm:$0xf]
    %v192 = vld [vmem:[%s1 + $0x240] sm:$0xf]
    %v193 = vld [vmem:[%s1 + $0x244] sm:$0xf]
    %v194 = vld [vmem:[%s1 + $0x248] sm:$0xf]
    %v195 = vld [vmem:[%s1 + $0x24c] sm:$0xf]
    %v196 = vld [vmem:[%s1 + $0x250] sm:$0xf]
    %v197 = vld [vmem:[%s1 + $0x254] sm:$0xf]
    %v198 = vld [vmem:[%s1 + $0x258] sm:$0xf]
    %v199 = vld [vmem:[%s1 + $0x25c] sm:$0xf]
    %v200 = vld [vmem:[%s1 + $0x260] sm:$0xf]
    %v201 = vld [vmem:[%s1 + $0x264] sm:$0xf]
    %v202 = vld [vmem:[%s1 + $0x268] sm:$0xf]
    %v203 = vld [vmem:[%s1 + $0x26c] sm:$0xf]
    %v204 = vld [vmem:[%s1 + $0x270] sm:$0xf]
    %v205 = vld [vmem:[%s1 + $0x274] sm:$0xf]
    %v206 = vld [vmem:[%s1 + $0x278] sm:$0xf]
    %v207 = vld [vmem:[%s1 + $0x27c] sm:$0xf]
    %v208 = vld [vmem:[%s1 + $0x280] sm:$0xf]
    %v209 = vld [vmem:[%s1 + $0x284] sm:$0xf]
    %v210 = vld [vmem:[%s1 + $0x288] sm:$0xf]
    %v211 = vld [vmem:[%s1 + $0x28c] sm:$0xf]
    %v212 = vld [vmem:[%s1 + $0x290] sm:$0xf]
    %v213 = vld [vmem:[%s1 + $0x294] sm:$0xf]
    %v214 = vld [vmem:[%s1 + $0x298] sm:$0xf]
    %v215 = vld [vmem:[%s1 + $0x29c] sm:$0xf]
    %v216 = vld [vmem:[%s1 + $0x2a0] sm:$0xf]
    %v217 = vld [vmem:[%s1 + $0x2a4] sm:$0xf]
    %v218 = vld [vmem:[%s1 + $0x2a8] sm:$0xf]
    %v219 = vld [vmem:[%s1 + $0x2ac] sm:$0xf]
    %v220 = vld [vmem:[%s1 + $0x2b0] sm:$0xf]
    %v221 = vld [vmem:[%s1 + $0x2b4] sm:$0xf]
    %v222 = vld [vmem:[%s1 + $0x2b8] sm:$0xf]
    %v223 = vld [vmem:[%s1 + $0x2bc] sm:$0xf]
    %v224 = vld [vmem:[%s1 + $0x2c0] sm:$0xf]
    %v225 = vld [vmem:[%s1 + $0x2c4] sm:$0xf]
    %v226 = vld [vmem:[%s1 + $0x2c8] sm:$0xf]
    %v227 = vld [vmem:[%s1 + $0x2cc] sm:$0xf]
    %v228 = vld [vmem:[%s1 + $0x2d0] sm:$0xf]
    %v229 = vld [vmem:[%s1 + $0x2d4] sm:$0xf]
    %v230 = vld [vmem:[%s1 + $0x2d8] sm:$0xf]
    %v231 = vld [vmem:[%s1 + $0x2dc] sm:$0xf]
    %v232 = vld [vmem:[%s1 + $0x2e0] sm:$0xf]
    %v233 = vld [vmem:[%s1 + $0x2e4] sm:$0xf]
    %v234 = vld [vmem:[%s1 + $0x2e8] sm:$0xf]
    %v235 = vld [vmem:[%s1 + $0x2ec] sm:$0xf]
    %v236 = vld [vmem:[%s1 + $0x2f0] sm:$0xf]
    %v237 = vld [vmem:[%s1 + $0x2f4] sm:$0xf]
    %v238 = vld [vmem:[%s1 + $0x2f8] sm:$0xf]
    %v239 = vld [vmem:[%s1 + $0x2fc] sm:$0xf]
    %v240 = vld [vmem:[%s1 + $0x300] sm:$0xf]
    %v241 = vld [vmem:[%s1 + $0x304] sm:$0xf]
    %v242 = vld [vmem:[%s1 + $0x308] sm:$0xf]
    %v243 = vld [vmem:[%s1 + $0x30c] sm:$0xf]
    %v244 = vld [vmem:[%s1 + $0x310] sm:$0xf]
    %v245 = vld [vmem:[%s1 + $0x314] sm:$0xf]
    %v246 = vld [vmem:[%s1 + $0x318] sm:$0xf]
    %v247 = vld [vmem:[%s1 + $0x31c] sm:$0xf]
    %v248 = vld [vmem:[%s1 + $0x320] sm:$0xf]
    %v249 = vld [vmem:[%s1 + $0x324] sm:$0xf]
    %v250 = vld [vmem:[%s1 + $0x328] sm:$0xf]
    %v251 = vld [vmem:[%s1 + $0x32c] sm:$0xf]
    %v252 = vld [vmem:[%s1 + $0x330] sm:$0xf]
    %v253 = vld [vmem:[%s1 + $0x334] sm:$0xf]
    %v254 = vld [vmem:[%s1 + $0x338] sm:$0xf]
    %v255 = vld [vmem:[%s1 + $0x33c] sm:$0xf]
    %v256 = vld [vmem:[%s1 + $0x340] sm:$0xf]
    %v257 = vld [vmem:[%s1 + $0x344] sm:$0xf]
    %v258 = vld [vmem:[%s1 + $0x348] sm:$0xf]
    %v259 = vld [vmem:[%s1 + $0x34c] sm:$0xf]
    %v260 = vld [vmem:[%s1 + $0x350] sm:$0xf]
    %v261 = vld [vmem:[%s1 + $0x354] sm:$0xf]
    %v262 = vld [vmem:[%s1 + $0x358] sm:$0xf]
    %v263 = vld [vmem:[%s1 + $0x35c] sm:$0xf]
    %v264 = vld [vmem:[%s1 + $0x360] sm:$0xf]
    %v265 = vld [vmem:[%s1 + $0x364] sm:$0xf]
    %v266 = vld [vmem:[%s1 + $0x368] sm:$0xf]
    %v267 = vld [vmem:[%s1 + $0x36c] sm:$0xf]
    %v268 = vld [vmem:[%s1 + $0x370] sm:$0xf]
    %v269 = vld [vmem:[%s1 + $0x374] sm:$0xf]
    %v270 = vld [vmem:[%s1 + $0x378] sm:$0xf]
    %v271 = vld [vmem:[%s1 + $0x37c] sm:$0xf]
    %v272 = vld [vmem:[%s1 + $0x380] sm:$0xf]
    %v273 = vld [vmem:[%s1 + $0x384] sm:$0xf]
    %v274 = vld [vmem:[%s1 + $0x388] sm:$0xf]
    %v275 = vld [vmem:[%s1 + $0x38c] sm:$0xf]
    %v276 = vld [vmem:[%s1 + $0x390] sm:$0xf]
    %v277 = vld [vmem:[%s1 + $0x394] sm:$0xf]
    %v278 = vld [vmem:[%s1 + $0x398] sm:$0xf]
    %v279 = vld [vmem:[%s1 + $0x39c] sm:$0xf]
    %v280 = vld [vmem:[%s1 + $0x3a0] sm:$0xf]
    %v281 = vld [vmem:[%s1 + $0x3a4] sm:$0xf]
    %v282 = vld [vmem:[%s1 + $0x3a8] sm:$0xf]
    %v283 = vld [vmem:[%s1 + $0x3ac] sm:$0xf]
    %v284 = vld [vmem:[%s1 + $0x3b0] sm:$0xf]
    %v285 = vld [vmem:[%s1 + $0x3b4] sm:$0xf]
    %v286 = vld [vmem:[%s1 + $0x3b8] sm:$0xf]
    %v287 = vld [vmem:[%s1 + $0x3bc] sm:$0xf]
    %v288 = vld [vmem:[%s1 + $0x3c0] sm:$0xf]
    %v289 = vld [vmem:[%s1 + $0x3c4] sm:$0xf]
    %v290 = vld [vmem:[%s1 + $0x3c8] sm:$0xf]
    %v291 = vld [vmem:[%s1 + $0x3cc] sm:$0xf]
    %v292 = vld [vmem:[%s1 + $0x3d0] sm:$0xf]
    %v293 = vld [vmem:[%s1 + $0x3d4] sm:$0xf]
    %v294 = vld [vmem:[%s1 + $0x3d8] sm:$0xf]
    %v295 = vld [vmem:[%s1 + $0x3dc] sm:$0xf]
    %v296 = vld [vmem:[%s1 + $0x3e0] sm:$0xf]
    %v297 = vld [vmem:[%s1 + $0x3e4] sm:$0xf]
    %v298 = vld [vmem:[%s1 + $0x3e8] sm:$0xf]
    %v299 = vld [vmem:[%s1 + $0x3ec] sm:$0xf]
    %v300 = vld [vmem:[%s1 + $0x3f0] sm:$0xf]
    %v301 = vld [vmem:[%s1 + $0x3f4] sm:$0xf]
    %v302 = vld [vmem:[%s1 + $0x3f8] sm:$0xf]
    %v303 = vld [vmem:[%s1 + $0x3fc] sm:$0xf]
    %v304 = vld [vmem:[%s2] sm:$0x1]
    %v306 = vlaneseq
    %v307 = vshrl.u32 %v306, 7
    %v308 = vsub.s32 0, %v307
    %v309 = vrot.slane %v304, %v308
    %v567 = vunpack.c.l.b16 %v48
    %v568 = vunpack.c.l.b16 %v49
    %v569 = vunpack.c.l.b16 %v50
    %v570 = vunpack.c.l.b16 %v51
    %v571 = vunpack.c.l.b16 %v52
    %v572 = vunpack.c.l.b16 %v53
    %v573 = vunpack.c.l.b16 %v54
    %v574 = vunpack.c.l.b16 %v55
    %v575 = vunpack.c.l.b16 %v56
    %v576 = vunpack.c.l.b16 %v57
    %v577 = vunpack.c.l.b16 %v58
    %v578 = vunpack.c.l.b16 %v59
    %v579 = vunpack.c.l.b16 %v60
    %v580 = vunpack.c.l.b16 %v61
    %v581 = vunpack.c.l.b16 %v62
    %v582 = vunpack.c.l.b16 %v63
    %v583 = vunpack.c.l.b16 %v64
    %v584 = vunpack.c.l.b16 %v65
    %v585 = vunpack.c.l.b16 %v66
    %v586 = vunpack.c.l.b16 %v67
    %v587 = vunpack.c.l.b16 %v68
    %v588 = vunpack.c.l.b16 %v69
    %v589 = vunpack.c.l.b16 %v70
    %v590 = vunpack.c.l.b16 %v71
    %v591 = vunpack.c.l.b16 %v72
    %v592 = vunpack.c.l.b16 %v73
    %v593 = vunpack.c.l.b16 %v74
    %v594 = vunpack.c.l.b16 %v75
    %v595 = vunpack.c.l.b16 %v76
    %v596 = vunpack.c.l.b16 %v77
    %v597 = vunpack.c.l.b16 %v78
    %v598 = vunpack.c.l.b16 %v79
    %v599 = vunpack.c.l.b16 %v80
    %v600 = vunpack.c.l.b16 %v81
    %v601 = vunpack.c.l.b16 %v82
    %v602 = vunpack.c.l.b16 %v83
    %v603 = vunpack.c.l.b16 %v84
    %v604 = vunpack.c.l.b16 %v85
    %v605 = vunpack.c.l.b16 %v86
    %v606 = vunpack.c.l.b16 %v87
    %v607 = vunpack.c.l.b16 %v88
    %v608 = vunpack.c.l.b16 %v89
    %v609 = vunpack.c.l.b16 %v90
    %v610 = vunpack.c.l.b16 %v91
    %v611 = vunpack.c.l.b16 %v92
    %v612 = vunpack.c.l.b16 %v93
    %v613 = vunpack.c.l.b16 %v94
    %v614 = vunpack.c.l.b16 %v95
    %v615 = vunpack.c.l.b16 %v96
    %v616 = vunpack.c.l.b16 %v97
    %v617 = vunpack.c.l.b16 %v98
    %v618 = vunpack.c.l.b16 %v99
    %v619 = vunpack.c.l.b16 %v100
    %v620 = vunpack.c.l.b16 %v101
    %v621 = vunpack.c.l.b16 %v102
    %v622 = vunpack.c.l.b16 %v103
    %v623 = vunpack.c.l.b16 %v104
    %v624 = vunpack.c.l.b16 %v105
    %v625 = vunpack.c.l.b16 %v106
    %v626 = vunpack.c.l.b16 %v107
    %v627 = vunpack.c.l.b16 %v108
    %v628 = vunpack.c.l.b16 %v109
    %v629 = vunpack.c.l.b16 %v110
    %v630 = vunpack.c.l.b16 %v111
    %v631 = vunpack.c.l.b16 %v112
    %v632 = vunpack.c.l.b16 %v113
    %v633 = vunpack.c.l.b16 %v114
    %v634 = vunpack.c.l.b16 %v115
    %v635 = vunpack.c.l.b16 %v116
    %v636 = vunpack.c.l.b16 %v117
    %v637 = vunpack.c.l.b16 %v118
    %v638 = vunpack.c.l.b16 %v119
    %v639 = vunpack.c.l.b16 %v120
    %v640 = vunpack.c.l.b16 %v121
    %v641 = vunpack.c.l.b16 %v122
    %v642 = vunpack.c.l.b16 %v123
    %v643 = vunpack.c.l.b16 %v124
    %v644 = vunpack.c.l.b16 %v125
    %v645 = vunpack.c.l.b16 %v126
    %v646 = vunpack.c.l.b16 %v127
    %v647 = vunpack.c.l.b16 %v128
    %v648 = vunpack.c.l.b16 %v129
    %v649 = vunpack.c.l.b16 %v130
    %v650 = vunpack.c.l.b16 %v131
    %v651 = vunpack.c.l.b16 %v132
    %v652 = vunpack.c.l.b16 %v133
    %v653 = vunpack.c.l.b16 %v134
    %v654 = vunpack.c.l.b16 %v135
    %v655 = vunpack.c.l.b16 %v136
    %v656 = vunpack.c.l.b16 %v137
    %v657 = vunpack.c.l.b16 %v138
    %v658 = vunpack.c.l.b16 %v139
    %v659 = vunpack.c.l.b16 %v140
    %v660 = vunpack.c.l.b16 %v141
    %v661 = vunpack.c.l.b16 %v142
    %v662 = vunpack.c.l.b16 %v143
    %v663 = vunpack.c.l.b16 %v144
    %v664 = vunpack.c.l.b16 %v145
    %v665 = vunpack.c.l.b16 %v146
    %v666 = vunpack.c.l.b16 %v147
    %v667 = vunpack.c.l.b16 %v148
    %v668 = vunpack.c.l.b16 %v149
    %v669 = vunpack.c.l.b16 %v150
    %v670 = vunpack.c.l.b16 %v151
    %v671 = vunpack.c.l.b16 %v152
    %v672 = vunpack.c.l.b16 %v153
    %v673 = vunpack.c.l.b16 %v154
    %v674 = vunpack.c.l.b16 %v155
    %v675 = vunpack.c.l.b16 %v156
    %v676 = vunpack.c.l.b16 %v157
    %v677 = vunpack.c.l.b16 %v158
    %v678 = vunpack.c.l.b16 %v159
    %v679 = vunpack.c.l.b16 %v160
    %v680 = vunpack.c.l.b16 %v161
    %v681 = vunpack.c.l.b16 %v162
    %v682 = vunpack.c.l.b16 %v163
    %v683 = vunpack.c.l.b16 %v164
    %v684 = vunpack.c.l.b16 %v165
    %v685 = vunpack.c.l.b16 %v166
    %v686 = vunpack.c.l.b16 %v167
    %v687 = vunpack.c.l.b16 %v168
    %v688 = vunpack.c.l.b16 %v169
    %v689 = vunpack.c.l.b16 %v170
    %v690 = vunpack.c.l.b16 %v171
    %v691 = vunpack.c.l.b16 %v172
    %v692 = vunpack.c.l.b16 %v173
    %v693 = vunpack.c.l.b16 %v174
    %v694 = vunpack.c.l.b16 %v175
    %v695 = vunpack.c.l.b16 %v176
    %v696 = vunpack.c.l.b16 %v177
    %v697 = vunpack.c.l.b16 %v178
    %v698 = vunpack.c.l.b16 %v179
    %v699 = vunpack.c.l.b16 %v180
    %v700 = vunpack.c.l.b16 %v181
    %v701 = vunpack.c.l.b16 %v182
    %v702 = vunpack.c.l.b16 %v183
    %v703 = vunpack.c.l.b16 %v184
    %v704 = vunpack.c.l.b16 %v185
    %v705 = vunpack.c.l.b16 %v186
    %v706 = vunpack.c.l.b16 %v187
    %v707 = vunpack.c.l.b16 %v188
    %v708 = vunpack.c.l.b16 %v189
    %v709 = vunpack.c.l.b16 %v190
    %v710 = vunpack.c.l.b16 %v191
    %v711 = vunpack.c.l.b16 %v192
    %v712 = vunpack.c.l.b16 %v193
    %v713 = vunpack.c.l.b16 %v194
    %v714 = vunpack.c.l.b16 %v195
    %v715 = vunpack.c.l.b16 %v196
    %v716 = vunpack.c.l.b16 %v197
    %v717 = vunpack.c.l.b16 %v198
    %v718 = vunpack.c.l.b16 %v199
    %v719 = vunpack.c.l.b16 %v200
    %v720 = vunpack.c.l.b16 %v201
    %v721 = vunpack.c.l.b16 %v202
    %v722 = vunpack.c.l.b16 %v203
    %v723 = vunpack.c.l.b16 %v204
    %v724 = vunpack.c.l.b16 %v205
    %v725 = vunpack.c.l.b16 %v206
    %v726 = vunpack.c.l.b16 %v207
    %v727 = vunpack.c.l.b16 %v208
    %v728 = vunpack.c.l.b16 %v209
    %v729 = vunpack.c.l.b16 %v210
    %v730 = vunpack.c.l.b16 %v211
    %v731 = vunpack.c.l.b16 %v212
    %v732 = vunpack.c.l.b16 %v213
    %v733 = vunpack.c.l.b16 %v214
    %v734 = vunpack.c.l.b16 %v215
    %v735 = vunpack.c.l.b16 %v216
    %v736 = vunpack.c.l.b16 %v217
    %v737 = vunpack.c.l.b16 %v218
    %v738 = vunpack.c.l.b16 %v219
    %v739 = vunpack.c.l.b16 %v220
    %v740 = vunpack.c.l.b16 %v221
    %v741 = vunpack.c.l.b16 %v222
    %v742 = vunpack.c.l.b16 %v223
    %v743 = vunpack.c.l.b16 %v224
    %v744 = vunpack.c.l.b16 %v225
    %v745 = vunpack.c.l.b16 %v226
    %v746 = vunpack.c.l.b16 %v227
    %v747 = vunpack.c.l.b16 %v228
    %v748 = vunpack.c.l.b16 %v229
    %v749 = vunpack.c.l.b16 %v230
    %v750 = vunpack.c.l.b16 %v231
    %v751 = vunpack.c.l.b16 %v232
    %v752 = vunpack.c.l.b16 %v233
    %v753 = vunpack.c.l.b16 %v234
    %v754 = vunpack.c.l.b16 %v235
    %v755 = vunpack.c.l.b16 %v236
    %v756 = vunpack.c.l.b16 %v237
    %v757 = vunpack.c.l.b16 %v238
    %v758 = vunpack.c.l.b16 %v239
    %v759 = vunpack.c.l.b16 %v240
    %v760 = vunpack.c.l.b16 %v241
    %v761 = vunpack.c.l.b16 %v242
    %v762 = vunpack.c.l.b16 %v243
    %v763 = vunpack.c.l.b16 %v244
    %v764 = vunpack.c.l.b16 %v245
    %v765 = vunpack.c.l.b16 %v246
    %v766 = vunpack.c.l.b16 %v247
    %v767 = vunpack.c.l.b16 %v248
    %v768 = vunpack.c.l.b16 %v249
    %v769 = vunpack.c.l.b16 %v250
    %v770 = vunpack.c.l.b16 %v251
    %v771 = vunpack.c.l.b16 %v252
    %v772 = vunpack.c.l.b16 %v253
    %v773 = vunpack.c.l.b16 %v254
    %v774 = vunpack.c.l.b16 %v255
    %v775 = vunpack.c.l.b16 %v256
    %v776 = vunpack.c.l.b16 %v257
    %v777 = vunpack.c.l.b16 %v258
    %v778 = vunpack.c.l.b16 %v259
    %v779 = vunpack.c.l.b16 %v260
    %v780 = vunpack.c.l.b16 %v261
    %v781 = vunpack.c.l.b16 %v262
    %v782 = vunpack.c.l.b16 %v263
    %v783 = vunpack.c.l.b16 %v264
    %v784 = vunpack.c.l.b16 %v265
    %v785 = vunpack.c.l.b16 %v266
    %v786 = vunpack.c.l.b16 %v267
    %v787 = vunpack.c.l.b16 %v268
    %v788 = vunpack.c.l.b16 %v269
    %v789 = vunpack.c.l.b16 %v270
    %v790 = vunpack.c.l.b16 %v271
    %v791 = vunpack.c.l.b16 %v272
    %v792 = vunpack.c.l.b16 %v273
    %v793 = vunpack.c.l.b16 %v274
    %v794 = vunpack.c.l.b16 %v275
    %v795 = vunpack.c.l.b16 %v276
    %v796 = vunpack.c.l.b16 %v277
    %v797 = vunpack.c.l.b16 %v278
    %v798 = vunpack.c.l.b16 %v279
    %v799 = vunpack.c.l.b16 %v280
    %v800 = vunpack.c.l.b16 %v281
    %v801 = vunpack.c.l.b16 %v282
    %v802 = vunpack.c.l.b16 %v283
    %v803 = vunpack.c.l.b16 %v284
    %v804 = vunpack.c.l.b16 %v285
    %v805 = vunpack.c.l.b16 %v286
    %v806 = vunpack.c.l.b16 %v287
    %v807 = vunpack.c.l.b16 %v288
    %v808 = vunpack.c.l.b16 %v289
    %v809 = vunpack.c.l.b16 %v290
    %v810 = vunpack.c.l.b16 %v291
    %v811 = vunpack.c.l.b16 %v292
    %v812 = vunpack.c.l.b16 %v293
    %v813 = vunpack.c.l.b16 %v294
    %v814 = vunpack.c.l.b16 %v295
    %v815 = vunpack.c.l.b16 %v296
    %v816 = vunpack.c.l.b16 %v297
    %v817 = vunpack.c.l.b16 %v298
    %v818 = vunpack.c.l.b16 %v299
    %v819 = vunpack.c.l.b16 %v300
    %v820 = vunpack.c.l.b16 %v301
    %v821 = vunpack.c.l.b16 %v302
    %v822 = vunpack.c.l.b16 %v303
    %v823 = vpack.c.b16 %v568, %v567
    %v824 = vpack.c.b16 %v570, %v569
    %v825 = vpack.c.b16 %v572, %v571
    %v826 = vpack.c.b16 %v574, %v573
    %v827 = vpack.c.b16 %v576, %v575
    %v828 = vpack.c.b16 %v578, %v577
    %v829 = vpack.c.b16 %v580, %v579
    %v830 = vpack.c.b16 %v582, %v581
    %v831 = vpack.c.b16 %v584, %v583
    %v832 = vpack.c.b16 %v586, %v585
    %v833 = vpack.c.b16 %v588, %v587
    %v834 = vpack.c.b16 %v590, %v589
    %v835 = vpack.c.b16 %v592, %v591
    %v836 = vpack.c.b16 %v594, %v593
    %v837 = vpack.c.b16 %v596, %v595
    %v838 = vpack.c.b16 %v598, %v597
    %v839 = vpack.c.b16 %v600, %v599
    %v840 = vpack.c.b16 %v602, %v601
    %v841 = vpack.c.b16 %v604, %v603
    %v842 = vpack.c.b16 %v606, %v605
    %v843 = vpack.c.b16 %v608, %v607
    %v844 = vpack.c.b16 %v610, %v609
    %v845 = vpack.c.b16 %v612, %v611
    %v846 = vpack.c.b16 %v614, %v613
    %v847 = vpack.c.b16 %v616, %v615
    %v848 = vpack.c.b16 %v618, %v617
    %v849 = vpack.c.b16 %v620, %v619
    %v850 = vpack.c.b16 %v622, %v621
    %v851 = vpack.c.b16 %v624, %v623
    %v852 = vpack.c.b16 %v626, %v625
    %v853 = vpack.c.b16 %v628, %v627
    %v854 = vpack.c.b16 %v630, %v629
    %v855 = vpack.c.b16 %v632, %v631
    %v856 = vpack.c.b16 %v634, %v633
    %v857 = vpack.c.b16 %v636, %v635
    %v858 = vpack.c.b16 %v638, %v637
    %v859 = vpack.c.b16 %v640, %v639
    %v860 = vpack.c.b16 %v642, %v641
    %v861 = vpack.c.b16 %v644, %v643
    %v862 = vpack.c.b16 %v646, %v645
    %v863 = vpack.c.b16 %v648, %v647
    %v864 = vpack.c.b16 %v650, %v649
    %v865 = vpack.c.b16 %v652, %v651
    %v866 = vpack.c.b16 %v654, %v653
    %v867 = vpack.c.b16 %v656, %v655
    %v868 = vpack.c.b16 %v658, %v657
    %v869 = vpack.c.b16 %v660, %v659
    %v870 = vpack.c.b16 %v662, %v661
    %v871 = vpack.c.b16 %v664, %v663
    %v872 = vpack.c.b16 %v666, %v665
    %v873 = vpack.c.b16 %v668, %v667
    %v874 = vpack.c.b16 %v670, %v669
    %v875 = vpack.c.b16 %v672, %v671
    %v876 = vpack.c.b16 %v674, %v673
    %v877 = vpack.c.b16 %v676, %v675
    %v878 = vpack.c.b16 %v678, %v677
    %v879 = vpack.c.b16 %v680, %v679
    %v880 = vpack.c.b16 %v682, %v681
    %v881 = vpack.c.b16 %v684, %v683
    %v882 = vpack.c.b16 %v686, %v685
    %v883 = vpack.c.b16 %v688, %v687
    %v884 = vpack.c.b16 %v690, %v689
    %v885 = vpack.c.b16 %v692, %v691
    %v886 = vpack.c.b16 %v694, %v693
    %v887 = vpack.c.b16 %v696, %v695
    %v888 = vpack.c.b16 %v698, %v697
    %v889 = vpack.c.b16 %v700, %v699
    %v890 = vpack.c.b16 %v702, %v701
    %v891 = vpack.c.b16 %v704, %v703
    %v892 = vpack.c.b16 %v706, %v705
    %v893 = vpack.c.b16 %v708, %v707
    %v894 = vpack.c.b16 %v710, %v709
    %v895 = vpack.c.b16 %v712, %v711
    %v896 = vpack.c.b16 %v714, %v713
    %v897 = vpack.c.b16 %v716, %v715
    %v898 = vpack.c.b16 %v718, %v717
    %v899 = vpack.c.b16 %v720, %v719
    %v900 = vpack.c.b16 %v722, %v721
    %v901 = vpack.c.b16 %v724, %v723
    %v902 = vpack.c.b16 %v726, %v725
    %v903 = vpack.c.b16 %v728, %v727
    %v904 = vpack.c.b16 %v730, %v729
    %v905 = vpack.c.b16 %v732, %v731
    %v906 = vpack.c.b16 %v734, %v733
    %v907 = vpack.c.b16 %v736, %v735
    %v908 = vpack.c.b16 %v738, %v737
    %v909 = vpack.c.b16 %v740, %v739
    %v910 = vpack.c.b16 %v742, %v741
    %v911 = vpack.c.b16 %v744, %v743
    %v912 = vpack.c.b16 %v746, %v745
    %v913 = vpack.c.b16 %v748, %v747
    %v914 = vpack.c.b16 %v750, %v749
    %v915 = vpack.c.b16 %v752, %v751
    %v916 = vpack.c.b16 %v754, %v753
    %v917 = vpack.c.b16 %v756, %v755
    %v918 = vpack.c.b16 %v758, %v757
    %v919 = vpack.c.b16 %v760, %v759
    %v920 = vpack.c.b16 %v762, %v761
    %v921 = vpack.c.b16 %v764, %v763
    %v922 = vpack.c.b16 %v766, %v765
    %v923 = vpack.c.b16 %v768, %v767
    %v924 = vpack.c.b16 %v770, %v769
    %v925 = vpack.c.b16 %v772, %v771
    %v926 = vpack.c.b16 %v774, %v773
    %v927 = vpack.c.b16 %v776, %v775
    %v928 = vpack.c.b16 %v778, %v777
    %v929 = vpack.c.b16 %v780, %v779
    %v930 = vpack.c.b16 %v782, %v781
    %v931 = vpack.c.b16 %v784, %v783
    %v932 = vpack.c.b16 %v786, %v785
    %v933 = vpack.c.b16 %v788, %v787
    %v934 = vpack.c.b16 %v790, %v789
    %v935 = vpack.c.b16 %v792, %v791
    %v936 = vpack.c.b16 %v794, %v793
    %v937 = vpack.c.b16 %v796, %v795
    %v938 = vpack.c.b16 %v798, %v797
    %v939 = vpack.c.b16 %v800, %v799
    %v940 = vpack.c.b16 %v802, %v801
    %v941 = vpack.c.b16 %v804, %v803
    %v942 = vpack.c.b16 %v806, %v805
    %v943 = vpack.c.b16 %v808, %v807
    %v944 = vpack.c.b16 %v810, %v809
    %v945 = vpack.c.b16 %v812, %v811
    %v946 = vpack.c.b16 %v814, %v813
    %v947 = vpack.c.b16 %v816, %v815
    %v948 = vpack.c.b16 %v818, %v817
    %v949 = vpack.c.b16 %v820, %v819
    %v950 = vpack.c.b16 %v822, %v821
    %1079 = vmatprep.subr.bf16.mxu0 0
    %1080 = vmatpush1.bf16.msra.mxu0 %v830
    %1081 = vmatprep.subr.bf16.mxu0 0
    %1082 = vmatpush1.bf16.msra.mxu0 %v829
    %1083 = vmatprep.subr.bf16.mxu0 0
    %1084 = vmatpush1.bf16.msra.mxu0 %v828
    %1085 = vmatprep.subr.bf16.mxu0 0
    %1086 = vmatpush1.bf16.msra.mxu0 %v827
    %1087 = vmatprep.subr.bf16.mxu0 0
    %1088 = vmatpush1.bf16.msra.mxu0 %v826
    %1089 = vmatprep.subr.bf16.mxu0 0
    %1090 = vmatpush1.bf16.msra.mxu0 %v825
    %1091 = vmatprep.subr.bf16.mxu0 0
    %1092 = vmatpush1.bf16.msra.mxu0 %v824
    %1093 = vmatprep.subr.bf16.mxu0 0
    %1094 = vmatpush1.bf16.msra.mxu0 %v823
    %1095 = vmatprep.subr.bf16.mxu0 0
    %1096 = vmatpush2.bf16.msra.mxu0 %v838
    %1097 = vmatprep.subr.bf16.mxu0 0
    %1098 = vmatpush2.bf16.msra.mxu0 %v837
    %1099 = vmatprep.subr.bf16.mxu0 0
    %1100 = vmatpush2.bf16.msra.mxu0 %v836
    %1101 = vmatprep.subr.bf16.mxu0 0
    %1102 = vmatpush2.bf16.msra.mxu0 %v835
    %1103 = vmatprep.subr.bf16.mxu0 0
    %1104 = vmatpush2.bf16.msra.mxu0 %v834
    %1105 = vmatprep.subr.bf16.mxu0 0
    %1106 = vmatpush2.bf16.msra.mxu0 %v833
    %1107 = vmatprep.subr.bf16.mxu0 0
    %1108 = vmatpush2.bf16.msra.mxu0 %v832
    %1109 = vmatprep.subr.bf16.mxu0 0
    %1110 = vmatpush2.bf16.msra.mxu0 %v831
    %1111 = vmatprep.mubr.bf16.mxu0 %v33
    %1112 = vmatmul.mubr.bf16.gmra.mxu0 %v32
    %v1113 = vpop.f32.mrf.mxu0
    %v1114 = vadd.f32 %v309, %v1113
    %v1115 = vpop.f32.mrf.mxu0
    %v1116 = vpop.f32.mrf.mxu0
    %v1117 = vpop.f32.mrf.mxu0
    %1118 = vdwg.mxu0
    %1119 = vmatprep.subr.bf16.mxu0 0
    %1120 = vmatpush1.bf16.msra.mxu0 %v846
    %1121 = vmatprep.subr.bf16.mxu0 0
    %1122 = vmatpush1.bf16.msra.mxu0 %v845
    %1123 = vmatprep.subr.bf16.mxu0 0
    %1124 = vmatpush1.bf16.msra.mxu0 %v844
    %1125 = vmatprep.subr.bf16.mxu0 0
    %1126 = vmatpush1.bf16.msra.mxu0 %v843
    %1127 = vmatprep.subr.bf16.mxu0 0
    %1128 = vmatpush1.bf16.msra.mxu0 %v842
    %1129 = vmatprep.subr.bf16.mxu0 0
    %1130 = vmatpush1.bf16.msra.mxu0 %v841
    %1131 = vmatprep.subr.bf16.mxu0 0
    %1132 = vmatpush1.bf16.msra.mxu0 %v840
    %1133 = vmatprep.subr.bf16.mxu0 0
    %1134 = vmatpush1.bf16.msra.mxu0 %v839
    %1135 = vmatprep.subr.bf16.mxu0 0
    %1136 = vmatpush2.bf16.msra.mxu0 %v854
    %1137 = vmatprep.subr.bf16.mxu0 0
    %1138 = vmatpush2.bf16.msra.mxu0 %v853
    %1139 = vmatprep.subr.bf16.mxu0 0
    %1140 = vmatpush2.bf16.msra.mxu0 %v852
    %1141 = vmatprep.subr.bf16.mxu0 0
    %1142 = vmatpush2.bf16.msra.mxu0 %v851
    %1143 = vmatprep.subr.bf16.mxu0 0
    %1144 = vmatpush2.bf16.msra.mxu0 %v850
    %1145 = vmatprep.subr.bf16.mxu0 0
    %1146 = vmatpush2.bf16.msra.mxu0 %v849
    %1147 = vmatprep.subr.bf16.mxu0 0
    %1148 = vmatpush2.bf16.msra.mxu0 %v848
    %1149 = vmatprep.subr.bf16.mxu0 0
    %1150 = vmatpush2.bf16.msra.mxu0 %v847
    %1151 = vmatprep.mubr.bf16.mxu0 %v35
    %1152 = vmatmul.mubr.bf16.gmra.mxu0 %v34
    %v1153 = vpop.f32.mrf.mxu0
    %v1154 = vadd.f32 %v1114, %v1153
    %v1155 = vpop.f32.mrf.mxu0
    %v1156 = vpop.f32.mrf.mxu0
    %v1157 = vpop.f32.mrf.mxu0
    %1158 = vdwg.mxu0
    %1159 = vmatprep.subr.bf16.mxu0 0
    %1160 = vmatpush1.bf16.msra.mxu0 %v862
    %1161 = vmatprep.subr.bf16.mxu0 0
    %1162 = vmatpush1.bf16.msra.mxu0 %v861
    %1163 = vmatprep.subr.bf16.mxu0 0
    %1164 = vmatpush1.bf16.msra.mxu0 %v860
    %1165 = vmatprep.subr.bf16.mxu0 0
    %1166 = vmatpush1.bf16.msra.mxu0 %v859
    %1167 = vmatprep.subr.bf16.mxu0 0
    %1168 = vmatpush1.bf16.msra.mxu0 %v858
    %1169 = vmatprep.subr.bf16.mxu0 0
    %1170 = vmatpush1.bf16.msra.mxu0 %v857
    %1171 = vmatprep.subr.bf16.mxu0 0
    %1172 = vmatpush1.bf16.msra.mxu0 %v856
    %1173 = vmatprep.subr.bf16.mxu0 0
    %1174 = vmatpush1.bf16.msra.mxu0 %v855
    %1175 = vmatprep.subr.bf16.mxu0 0
    %1176 = vmatpush2.bf16.msra.mxu0 %v870
    %1177 = vmatprep.subr.bf16.mxu0 0
    %1178 = vmatpush2.bf16.msra.mxu0 %v869
    %1179 = vmatprep.subr.bf16.mxu0 0
    %1180 = vmatpush2.bf16.msra.mxu0 %v868
    %1181 = vmatprep.subr.bf16.mxu0 0
    %1182 = vmatpush2.bf16.msra.mxu0 %v867
    %1183 = vmatprep.subr.bf16.mxu0 0
    %1184 = vmatpush2.bf16.msra.mxu0 %v866
    %1185 = vmatprep.subr.bf16.mxu0 0
    %1186 = vmatpush2.bf16.msra.mxu0 %v865
    %1187 = vmatprep.subr.bf16.mxu0 0
    %1188 = vmatpush2.bf16.msra.mxu0 %v864
    %1189 = vmatprep.subr.bf16.mxu0 0
    %1190 = vmatpush2.bf16.msra.mxu0 %v863
    %1191 = vmatprep.mubr.bf16.mxu0 %v37
    %1192 = vmatmul.mubr.bf16.gmra.mxu0 %v36
    %v1193 = vpop.f32.mrf.mxu0
    %v1194 = vadd.f32 %v1154, %v1193
    %v1195 = vpop.f32.mrf.mxu0
    %v1196 = vpop.f32.mrf.mxu0
    %v1197 = vpop.f32.mrf.mxu0
    %1198 = vdwg.mxu0
    %1199 = vmatprep.subr.bf16.mxu0 0
    %1200 = vmatpush1.bf16.msra.mxu0 %v878
    %1201 = vmatprep.subr.bf16.mxu0 0
    %1202 = vmatpush1.bf16.msra.mxu0 %v877
    %1203 = vmatprep.subr.bf16.mxu0 0
    %1204 = vmatpush1.bf16.msra.mxu0 %v876
    %1205 = vmatprep.subr.bf16.mxu0 0
    %1206 = vmatpush1.bf16.msra.mxu0 %v875
    %1207 = vmatprep.subr.bf16.mxu0 0
    %1208 = vmatpush1.bf16.msra.mxu0 %v874
    %1209 = vmatprep.subr.bf16.mxu0 0
    %1210 = vmatpush1.bf16.msra.mxu0 %v873
    %1211 = vmatprep.subr.bf16.mxu0 0
    %1212 = vmatpush1.bf16.msra.mxu0 %v872
    %1213 = vmatprep.subr.bf16.mxu0 0
    %1214 = vmatpush1.bf16.msra.mxu0 %v871
    %1215 = vmatprep.subr.bf16.mxu0 0
    %1216 = vmatpush2.bf16.msra.mxu0 %v886
    %1217 = vmatprep.subr.bf16.mxu0 0
    %1218 = vmatpush2.bf16.msra.mxu0 %v885
    %1219 = vmatprep.subr.bf16.mxu0 0
    %1220 = vmatpush2.bf16.msra.mxu0 %v884
    %1221 = vmatprep.subr.bf16.mxu0 0
    %1222 = vmatpush2.bf16.msra.mxu0 %v883
    %1223 = vmatprep.subr.bf16.mxu0 0
    %1224 = vmatpush2.bf16.msra.mxu0 %v882
    %1225 = vmatprep.subr.bf16.mxu0 0
    %1226 = vmatpush2.bf16.msra.mxu0 %v881
    %1227 = vmatprep.subr.bf16.mxu0 0
    %1228 = vmatpush2.bf16.msra.mxu0 %v880
    %1229 = vmatprep.subr.bf16.mxu0 0
    %1230 = vmatpush2.bf16.msra.mxu0 %v879
    %1231 = vmatprep.mubr.bf16.mxu0 %v39
    %1232 = vmatmul.mubr.bf16.gmra.mxu0 %v38
    %v1233 = vpop.f32.mrf.mxu0
    %v1234 = vadd.f32 %v1194, %v1233
    %v1235 = vpop.f32.mrf.mxu0
    %v1236 = vpop.f32.mrf.mxu0
    %v1237 = vpop.f32.mrf.mxu0
    %1238 = vdwg.mxu0
    %1239 = vmatprep.subr.bf16.mxu0 0
    %1240 = vmatpush1.bf16.msra.mxu0 %v894
    %1241 = vmatprep.subr.bf16.mxu0 0
    %1242 = vmatpush1.bf16.msra.mxu0 %v893
    %1243 = vmatprep.subr.bf16.mxu0 0
    %1244 = vmatpush1.bf16.msra.mxu0 %v892
    %1245 = vmatprep.subr.bf16.mxu0 0
    %1246 = vmatpush1.bf16.msra.mxu0 %v891
    %1247 = vmatprep.subr.bf16.mxu0 0
    %1248 = vmatpush1.bf16.msra.mxu0 %v890
    %1249 = vmatprep.subr.bf16.mxu0 0
    %1250 = vmatpush1.bf16.msra.mxu0 %v889
    %1251 = vmatprep.subr.bf16.mxu0 0
    %1252 = vmatpush1.bf16.msra.mxu0 %v888
    %1253 = vmatprep.subr.bf16.mxu0 0
    %1254 = vmatpush1.bf16.msra.mxu0 %v887
    %1255 = vmatprep.subr.bf16.mxu0 0
    %1256 = vmatpush2.bf16.msra.mxu0 %v902
    %1257 = vmatprep.subr.bf16.mxu0 0
    %1258 = vmatpush2.bf16.msra.mxu0 %v901
    %1259 = vmatprep.subr.bf16.mxu0 0
    %1260 = vmatpush2.bf16.msra.mxu0 %v900
    %1261 = vmatprep.subr.bf16.mxu0 0
    %1262 = vmatpush2.bf16.msra.mxu0 %v899
    %1263 = vmatprep.subr.bf16.mxu0 0
    %1264 = vmatpush2.bf16.msra.mxu0 %v898
    %1265 = vmatprep.subr.bf16.mxu0 0
    %1266 = vmatpush2.bf16.msra.mxu0 %v897
    %1267 = vmatprep.subr.bf16.mxu0 0
    %1268 = vmatpush2.bf16.msra.mxu0 %v896
    %1269 = vmatprep.subr.bf16.mxu0 0
    %1270 = vmatpush2.bf16.msra.mxu0 %v895
    %1271 = vmatprep.mubr.bf16.mxu0 %v41
    %1272 = vmatmul.mubr.bf16.gmra.mxu0 %v40
    %v1273 = vpop.f32.mrf.mxu0
    %v1274 = vadd.f32 %v1234, %v1273
    %v1275 = vpop.f32.mrf.mxu0
    %v1276 = vpop.f32.mrf.mxu0
    %v1277 = vpop.f32.mrf.mxu0
    %1278 = vdwg.mxu0
    %1279 = vmatprep.subr.bf16.mxu0 0
    %1280 = vmatpush1.bf16.msra.mxu0 %v910
    %1281 = vmatprep.subr.bf16.mxu0 0
    %1282 = vmatpush1.bf16.msra.mxu0 %v909
    %1283 = vmatprep.subr.bf16.mxu0 0
    %1284 = vmatpush1.bf16.msra.mxu0 %v908
    %1285 = vmatprep.subr.bf16.mxu0 0
    %1286 = vmatpush1.bf16.msra.mxu0 %v907
    %1287 = vmatprep.subr.bf16.mxu0 0
    %1288 = vmatpush1.bf16.msra.mxu0 %v906
    %1289 = vmatprep.subr.bf16.mxu0 0
    %1290 = vmatpush1.bf16.msra.mxu0 %v905
    %1291 = vmatprep.subr.bf16.mxu0 0
    %1292 = vmatpush1.bf16.msra.mxu0 %v904
    %1293 = vmatprep.subr.bf16.mxu0 0
    %1294 = vmatpush1.bf16.msra.mxu0 %v903
    %1295 = vmatprep.subr.bf16.mxu0 0
    %1296 = vmatpush2.bf16.msra.mxu0 %v918
    %1297 = vmatprep.subr.bf16.mxu0 0
    %1298 = vmatpush2.bf16.msra.mxu0 %v917
    %1299 = vmatprep.subr.bf16.mxu0 0
    %1300 = vmatpush2.bf16.msra.mxu0 %v916
    %1301 = vmatprep.subr.bf16.mxu0 0
    %1302 = vmatpush2.bf16.msra.mxu0 %v915
    %1303 = vmatprep.subr.bf16.mxu0 0
    %1304 = vmatpush2.bf16.msra.mxu0 %v914
    %1305 = vmatprep.subr.bf16.mxu0 0
    %1306 = vmatpush2.bf16.msra.mxu0 %v913
    %1307 = vmatprep.subr.bf16.mxu0 0
    %1308 = vmatpush2.bf16.msra.mxu0 %v912
    %1309 = vmatprep.subr.bf16.mxu0 0
    %1310 = vmatpush2.bf16.msra.mxu0 %v911
    %1311 = vmatprep.mubr.bf16.mxu0 %v43
    %1312 = vmatmul.mubr.bf16.gmra.mxu0 %v42
    %v1313 = vpop.f32.mrf.mxu0
    %v1314 = vadd.f32 %v1274, %v1313
    %v1315 = vpop.f32.mrf.mxu0
    %v1316 = vpop.f32.mrf.mxu0
    %v1317 = vpop.f32.mrf.mxu0
    %1318 = vdwg.mxu0
    %1319 = vmatprep.subr.bf16.mxu0 0
    %1320 = vmatpush1.bf16.msra.mxu0 %v926
    %1321 = vmatprep.subr.bf16.mxu0 0
    %1322 = vmatpush1.bf16.msra.mxu0 %v925
    %1323 = vmatprep.subr.bf16.mxu0 0
    %1324 = vmatpush1.bf16.msra.mxu0 %v924
    %1325 = vmatprep.subr.bf16.mxu0 0
    %1326 = vmatpush1.bf16.msra.mxu0 %v923
    %1327 = vmatprep.subr.bf16.mxu0 0
    %1328 = vmatpush1.bf16.msra.mxu0 %v922
    %1329 = vmatprep.subr.bf16.mxu0 0
    %1330 = vmatpush1.bf16.msra.mxu0 %v921
    %1331 = vmatprep.subr.bf16.mxu0 0
    %1332 = vmatpush1.bf16.msra.mxu0 %v920
    %1333 = vmatprep.subr.bf16.mxu0 0
    %1334 = vmatpush1.bf16.msra.mxu0 %v919
    %1335 = vmatprep.subr.bf16.mxu0 0
    %1336 = vmatpush2.bf16.msra.mxu0 %v934
    %1337 = vmatprep.subr.bf16.mxu0 0
    %1338 = vmatpush2.bf16.msra.mxu0 %v933
    %1339 = vmatprep.subr.bf16.mxu0 0
    %1340 = vmatpush2.bf16.msra.mxu0 %v932
    %1341 = vmatprep.subr.bf16.mxu0 0
    %1342 = vmatpush2.bf16.msra.mxu0 %v931
    %1343 = vmatprep.subr.bf16.mxu0 0
    %1344 = vmatpush2.bf16.msra.mxu0 %v930
    %1345 = vmatprep.subr.bf16.mxu0 0
    %1346 = vmatpush2.bf16.msra.mxu0 %v929
    %1347 = vmatprep.subr.bf16.mxu0 0
    %1348 = vmatpush2.bf16.msra.mxu0 %v928
    %1349 = vmatprep.subr.bf16.mxu0 0
    %1350 = vmatpush2.bf16.msra.mxu0 %v927
    %1351 = vmatprep.mubr.bf16.mxu0 %v45
    %1352 = vmatmul.mubr.bf16.gmra.mxu0 %v44
    %v1353 = vpop.f32.mrf.mxu0
    %v1354 = vadd.f32 %v1314, %v1353
    %v1355 = vpop.f32.mrf.mxu0
    %v1356 = vpop.f32.mrf.mxu0
    %v1357 = vpop.f32.mrf.mxu0
    %1358 = vdwg.mxu0
    %1359 = vmatprep.subr.bf16.mxu0 0
    %1360 = vmatpush1.bf16.msra.mxu0 %v942
    %1361 = vmatprep.subr.bf16.mxu0 0
    %1362 = vmatpush1.bf16.msra.mxu0 %v941
    %1363 = vmatprep.subr.bf16.mxu0 0
    %1364 = vmatpush1.bf16.msra.mxu0 %v940
    %1365 = vmatprep.subr.bf16.mxu0 0
    %1366 = vmatpush1.bf16.msra.mxu0 %v939
    %1367 = vmatprep.subr.bf16.mxu0 0
    %1368 = vmatpush1.bf16.msra.mxu0 %v938
    %1369 = vmatprep.subr.bf16.mxu0 0
    %1370 = vmatpush1.bf16.msra.mxu0 %v937
    %1371 = vmatprep.subr.bf16.mxu0 0
    %1372 = vmatpush1.bf16.msra.mxu0 %v936
    %1373 = vmatprep.subr.bf16.mxu0 0
    %1374 = vmatpush1.bf16.msra.mxu0 %v935
    %1375 = vmatprep.subr.bf16.mxu0 0
    %1376 = vmatpush2.bf16.msra.mxu0 %v950
    %1377 = vmatprep.subr.bf16.mxu0 0
    %1378 = vmatpush2.bf16.msra.mxu0 %v949
    %1379 = vmatprep.subr.bf16.mxu0 0
    %1380 = vmatpush2.bf16.msra.mxu0 %v948
    %1381 = vmatprep.subr.bf16.mxu0 0
    %1382 = vmatpush2.bf16.msra.mxu0 %v947
    %1383 = vmatprep.subr.bf16.mxu0 0
    %1384 = vmatpush2.bf16.msra.mxu0 %v946
    %1385 = vmatprep.subr.bf16.mxu0 0
    %1386 = vmatpush2.bf16.msra.mxu0 %v945
    %1387 = vmatprep.subr.bf16.mxu0 0
    %1388 = vmatpush2.bf16.msra.mxu0 %v944
    %1389 = vmatprep.subr.bf16.mxu0 0
    %1390 = vmatpush2.bf16.msra.mxu0 %v943
    %1391 = vmatprep.mubr.bf16.mxu0 %v47
    %1392 = vmatmul.mubr.bf16.gmra.mxu0 %v46
    %v1393 = vpop.f32.mrf.mxu0
    %v1394 = vadd.f32 %v1354, %v1393
    %v1395 = vpop.f32.mrf.mxu0
    %v1396 = vpop.f32.mrf.mxu0
    %v1397 = vpop.f32.mrf.mxu0
    %1398 = vdwg.mxu0
    %v1399 = vxor.u32 %v1394, 2147483648
    %v1400 = vmul.f32 %v1399, 1.442695
    %v1401 = vpow.pop %v1400
    %v1402 = vadd.f32 %v1401, 1.0
    %v1403 = vrcp.pop %v1402
    %v1404 = vmul.f32 1.0, %v1403
    %vm1405 = vcmask 97280
    %1406 = vst.msk [vmem:[#allocation2] sm:$0xff] %vm1405, %v1404
    // Predicated region
    $region14: #{tpu_custom_call.1} parent=1 // pred_check
      _
    $region15: #{tpu_custom_call.1} parent=1 // pred_check_branch
      %1408 = sbr.rel (0) target = $region17
    $region16: #{tpu_custom_call.1} parent=1 // pred_region
      %s1410 = ssub.s32 128, 128
      %1411 = vsyncadd [#allocation3], %s1410
      %s1413 = sshll.u32 [#allocation2], 4
      %s1414 = int_to_ptr.vmem [resolvable:$true] %s1413
      %1416 = dma.vmem_to_hbm [thread:$0]  %s1414, 128, %s3, [#allocation3]
    $region17: #{tpu_custom_call.1} parent=1 // pred_fallthru
      _
    // Predicated region
    $region18: #{tpu_custom_call.1} parent=1 // pred_check
      _
    $region19: #{tpu_custom_call.1} parent=1 // pred_check_branch
      %1418 = sbr.rel (0) target = $region21
    $region20: #{tpu_custom_call.1} parent=1 // pred_region
      %1419 = dma.done [#allocation3], 128
    $region21: #{tpu_custom_call.1} parent=1 // pred_fallthru
      _
    %1420 = vsyncpa [#allocation3], 1

</llo_original>
